<compile_context>
chip_gen: v5e
topology: v5e:2x2
jax: 0.10.0
libtpu: 0.0.40
codegen_flags: <defaults>
</compile_context>

<pallas_src>
import jax
import jax.numpy as jnp
from jax.experimental import pallas as pl
from jax.experimental.pallas import tpu as pltpu


def _round_up(x: int, m: int) -> int:
    return ((x + m - 1) // m) * m


def _embed_kernel(ids_ref, table_ref, out_ref):
    # ids_ref:   VMEM (row_block, 1) int32   -- flattened timestep ids
    # table_ref: VMEM (max_len, d)           -- full embedding table, resident
    # out_ref:   VMEM (row_block, d)         -- gathered embeddings (dense slab)
    ids = ids_ref[...]                                   # (row_block, 1)
    row_block = ids.shape[0]
    max_len = table_ref.shape[0]

    # One-hot gather on the MXU: one_hot[r, v] = (v == ids[r]).
    iota = jax.lax.broadcasted_iota(jnp.int32, (row_block, max_len), 1)
    one_hot = (iota == ids).astype(table_ref.dtype)      # exact 0/1 rows

    out_ref[...] = jnp.dot(
        one_hot, table_ref[...], preferred_element_type=jnp.float32
    ).astype(out_ref.dtype)


def timestep_encoder(timesteps: jax.Array, emb_table: jax.Array) -> jax.Array:
    """Pallas equivalent of nn.Embedding(max_len_episode, output_size)(timesteps)."""
    max_len, d = emb_table.shape
    orig_shape = timesteps.shape

    ids = timesteps.reshape(-1).astype(jnp.int32)
    # nn.Embedding errors on out-of-range indices; here we clip defensively.
    ids = jnp.clip(ids, 0, max_len - 1)
    n = ids.shape[0]

    # Row tiling: one step for small n; 256-row blocks (parallel) for large n.
    ROW_BLOCK = 256
    if n <= ROW_BLOCK:
        n_pad = _round_up(max(n, 1), 8)   # sublane-multiple, dense stores
        row_block = n_pad
    else:
        n_pad = _round_up(n, ROW_BLOCK)
        row_block = ROW_BLOCK
    grid = (n_pad // row_block,)

    # Pad ids (padded rows gather row 0 and are sliced off afterwards).
    ids_col = jnp.zeros((n_pad, 1), jnp.int32).at[:n, 0].set(ids)

    out_flat = pl.pallas_call(
        _embed_kernel,
        out_shape=jax.ShapeDtypeStruct((n_pad, d), emb_table.dtype),
        grid=grid,
        in_specs=[
            pl.BlockSpec((row_block, 1), lambda i: (i, 0)),   # ids block
            pl.BlockSpec((max_len, d), lambda i: (0, 0)),     # full table, resident
        ],
        out_specs=pl.BlockSpec((row_block, d), lambda i: (i, 0)),
        compiler_params=pltpu.CompilerParams(
            dimension_semantics=("parallel",),   # independent row blocks (v7x megacore)
        ),
    )(ids_col, emb_table)

    return out_flat[:n].reshape(*orig_shape, d)


if __name__ == "__main__":
    key = jax.random.PRNGKey(0)
    k_emb, k_ts = jax.random.split(key)

    max_len_episode = 64   # vocabulary size of the timestep embedding
    output_size = 128      # embedding dim (lane-aligned)
    batch, seq = 2, 8

    # nn.Embedding default init: N(0, 1)
    emb_table = jax.random.normal(
        k_emb, (max_len_episode, output_size), dtype=jnp.float32
    )
    timesteps = jax.random.randint(
        k_ts, (batch, seq), 0, max_len_episode, dtype=jnp.int32
    )

    out = timestep_encoder(timesteps, emb_table)
    out = jax.block_until_ready(out)

    # Reference check against plain JAX gather (== PyTorch nn.Embedding forward).
    ref = emb_table[timesteps]
    assert out.shape == (batch, seq, output_size), out.shape
    assert out.dtype == jnp.float32
    assert jnp.allclose(out, ref), "mismatch vs reference embedding lookup"

    # TODO(synk): a standalone gather kernel adds little over XLA's native
    # embedding lookup; fuse the downstream consumer (projection/MLP) into this
    # kernel in production to amortize launch + DMA cost over real FLOPs.
    print("KERNEL_OK")
</pallas_src>

<mosaic_0001>
module attributes {stable_mosaic.version = 11 : i64} {
  func.func @_embed_kernel(%arg0: i32, %arg1: memref<16x1xi32, #tpu.memory_space<vmem>>, %arg2: memref<64x128xf32, #tpu.memory_space<vmem>>, %arg3: memref<16x128xf32, #tpu.memory_space<vmem>>) attributes {dimension_semantics = [#tpu.dimension_semantics<parallel>], iteration_bounds = array<i64: 1>, scalar_prefetch = 0 : i64, scratch_operands = 0 : i64, tpu.core_type = #tpu.core_type<tc>, window_params = [{transform_indices = @transform_0, window_bounds = array<i64: 16, 1>}, {pipeline_mode = #tpu.pipeline_mode<synchronous>, transform_indices = @transform_1, window_bounds = array<i64: 64, 128>}, {transform_indices = @transform_2, window_bounds = array<i64: 16, 128>}]} {
    %c0 = arith.constant 0 : index
    %c0_0 = arith.constant 0 : index
    %0 = vector.load %arg1[%c0, %c0_0] : memref<16x1xi32, #tpu.memory_space<vmem>>, vector<16x1xi32>
    %1 = tpu.iota {dimensions = array<i32: 1>} : vector<16x64xi32>
    %2 = vector.broadcast %0 : vector<16x1xi32> to vector<16x64xi32>
    %3 = arith.cmpi eq, %1, %2 : vector<16x64xi32>
    %4 = arith.extui %3 : vector<16x64xi1> to vector<16x64xi32>
    %5 = arith.sitofp %4 : vector<16x64xi32> to vector<16x64xf32>
    %c0_1 = arith.constant 0 : index
    %c0_2 = arith.constant 0 : index
    %6 = vector.load %arg2[%c0_1, %c0_2] : memref<64x128xf32, #tpu.memory_space<vmem>>, vector<64x128xf32>
    %cst = arith.constant dense<0.000000e+00> : vector<16x128xf32>
    %7 = tpu.matmul %5, %6, %cst {dimension_numbers = #tpu.dot_dimension_numbers<[1], [0], [0], [1], [0, 0, 1, 1], [], []>} : vector<16x64xf32>, vector<64x128xf32>, vector<16x128xf32> -> vector<16x128xf32>
    %c0_3 = arith.constant 0 : index
    %c0_4 = arith.constant 0 : index
    %8 = vector.load %arg3[%c0_3, %c0_4] : memref<16x128xf32, #tpu.memory_space<vmem>>, vector<16x128xf32>
    tpu.vector_store %arg3[%c0_3, %c0_4], %7 {strides = array<i32>} : memref<16x128xf32, #tpu.memory_space<vmem>>, vector<16x128xf32>,
    return
  }
  func.func @transform_0(%arg0: i32) -> (i32, i32) {
    %c0_i32 = arith.constant 0 : i32
    %c0_i32_0 = arith.constant 0 : i32
    return %arg0, %c0_i32 : i32, i32
  }
  func.func @transform_1(%arg0: i32) -> (i32, i32) {
    %c0_i32 = arith.constant 0 : i32
    %c0_i32_0 = arith.constant 0 : i32
    %c0_i32_1 = arith.constant 0 : i32
    return %c0_i32, %c0_i32_0 : i32, i32
  }
  func.func @transform_2(%arg0: i32) -> (i32, i32) {
    %c0_i32 = arith.constant 0 : i32
    %c0_i32_0 = arith.constant 0 : i32
    return %arg0, %c0_i32 : i32, i32
  }
}

</mosaic_0001>

<llo_original>
// kernel: tpu_custom_call.1
$region0: #{tpu_custom_call.1}
  #allocation0 [shape = 'u32[]', space=smem, size = 0x4, offset = 0x4, fixed_abs, tag = 'smem constant byte address 0x4 - core index']
  #allocation1 [shape = 'u32[72,128]{1,0:T(1,128)}', space=vmem, size = 0x9000, scoped, tag = 'internal scratch']
  %s0 = inlined_call_operand.vmem [shape: s32[16,1], index: 0, kind: input, shape index: {}]
  %s1 = inlined_call_operand.hbm [shape: f32[64,128], index: 1, kind: input, shape index: {}]
  %s2 = inlined_call_operand.hbm [shape: f32[16,128], index: 2, kind: output, shape index: {}]
  %s3 = sld [smem:[#allocation0]]
  $region22: #{tpu_custom_call.1} parent=0
    _
  %s5 = ssub.s32 1, %s3
  %s6 = scalar_select 0, %s5, %s3
  $region1: #{tpu_custom_call.1} parent=0
    #allocation2 [shape = 'u8[32768]{0}', space=vmem, size = 0x8000, scoped, tag = 'input window, operand 1, single buffered']
    #allocation3 [shape = 's32[1]{0}', space=sflag, size = 0x4, scoped, tag = 'scoped memory for tpu_custom_call.1']
    #allocation4 [shape = 's32[1]{0}', space=sflag, size = 0x4, scoped, tag = 'scoped memory for tpu_custom_call.1']
    #allocation5 [shape = 'u8[8192]{0}', space=vmem, size = 0x2000, scoped, tag = 'output window, operand 0, single buffered']
    %7 = vsyncpa [#allocation3], 0
    %8 = vsyncpa [#allocation4], 0
    // Predicated region
    $region2: #{tpu_custom_call.1} parent=1 // pred_check
      _
    $region3: #{tpu_custom_call.1} parent=1 // pred_check_branch
      %10 = sbr.rel (0) target = $region5
    $region4: #{tpu_custom_call.1} parent=1 // pred_region
      _
    $region5: #{tpu_custom_call.1} parent=1 // pred_fallthru
      _
    // Predicated region
    $region6: #{tpu_custom_call.1} parent=1 // pred_check
      _
    $region7: #{tpu_custom_call.1} parent=1 // pred_check_branch
      %12 = sbr.rel (0) target = $region9
    $region8: #{tpu_custom_call.1} parent=1 // pred_region
      %14 = vsyncadd [#allocation3], 0
      %s15 = sshll.u32 %s1, 4
      %s16 = int_to_ptr.hbm [resolvable:$true] %s15
      %s17 = sshll.u32 [#allocation2], 4
      %s18 = int_to_ptr.vmem [resolvable:$true] %s17
      %23 = dma.hbm_to_vmem [thread:$0]  %s16, 1024, %s18, [#allocation3], 128, 128, 8
    $region9: #{tpu_custom_call.1} parent=1 // pred_fallthru
      _
    // Predicated region
    $region10: #{tpu_custom_call.1} parent=1 // pred_check
      _
    $region11: #{tpu_custom_call.1} parent=1 // pred_check_branch
      %25 = sbr.rel (0) target = $region13
    $region12: #{tpu_custom_call.1} parent=1 // pred_region
      %27 = dma.done [#allocation3], 1024
    $region13: #{tpu_custom_call.1} parent=1 // pred_fallthru
      _
    %v28 = vld [vmem:[%s0] sm:$0xff]
    %v29 = vld [vmem:[%s0 + $0x8] sm:$0xff]
    %v30 = vlaneseq
    %v31 = vand.u32 %v30, 127
    %32 = vset.pattern.permute.xlu0 0
    %33 = vperm.xlu0 %32, %v28
    %v34 = vpop.permute.xlu0 %33
    %35 = vset.pattern.permute.xlu0 0
    %36 = vperm.xlu0 %35, %v29
    %v37 = vpop.permute.xlu0 %36
    %vm38 = vcmp.eq.s32.totalorder %v31, %v34
    %vm39 = vcmp.eq.s32.totalorder %v31, %v37
    %v40 = vsel %vm38, 1, 0
    %v41 = vsel %vm39, 1, 0
    %v42 = vcvt.s32.f32 %v40
    %v43 = vcvt.s32.f32 %v41
    %v44 = vld [vmem:[#allocation2] sm:$0xff]
    %v45 = vld [vmem:[#allocation2 + $0x8] sm:$0xff]
    %v46 = vld [vmem:[#allocation2 + $0x10] sm:$0xff]
    %v47 = vld [vmem:[#allocation2 + $0x18] sm:$0xff]
    %v48 = vld [vmem:[#allocation2 + $0x20] sm:$0xff]
    %v49 = vld [vmem:[#allocation2 + $0x28] sm:$0xff]
    %v50 = vld [vmem:[#allocation2 + $0x30] sm:$0xff]
    %v51 = vld [vmem:[#allocation2 + $0x38] sm:$0xff]
    %vm52 = vcmask 523264
    %v54 = vsel %vm52, %v42, 0
    %v57 = vsel %vm52, %v43, 0
    %59 = vmatpush.msra.mxu0 0.0
    %60 = vmatpush.msra.mxu0 0.0
    %61 = vmatpush.msra.mxu0 0.0
    %62 = vmatpush.msra.mxu0 0.0
    %63 = vmatpush.msra.mxu0 0.0
    %64 = vmatpush.msra.mxu0 0.0
    %65 = vmatpush.msra.mxu0 0.0
    %66 = vmatpush.msra.mxu0 0.0
    %67 = vmatpush.msra.mxu0 %v51
    %68 = vmatpush.msra.mxu0 %v50
    %69 = vmatpush.msra.mxu0 %v49
    %70 = vmatpush.msra.mxu0 %v48
    %71 = vmatpush.msra.mxu0 %v47
    %72 = vmatpush.msra.mxu0 %v46
    %73 = vmatpush.msra.mxu0 %v45
    %74 = vmatpush.msra.mxu0 %v44
    %75 = vmatmul.f32.gmra.mxu0 %v54
    %v76 = vpop.f32.mrf.mxu0
    %v77 = vadd.f32 0.0, %v76
    %78 = vmatmul.f32.gmra.mxu0 %v57
    %v79 = vpop.f32.mrf.mxu0
    %v80 = vadd.f32 0.0, %v79
    %81 = vdwg.mxu0
    %82 = vst [vmem:[#allocation5] sm:$0xff] %v77
    %83 = vst [vmem:[#allocation5 + $0x8] sm:$0xff] %v80
    // Predicated region
    $region14: #{tpu_custom_call.1} parent=1 // pred_check
      _
    $region15: #{tpu_custom_call.1} parent=1 // pred_check_branch
      %85 = sbr.rel (0) target = $region17
    $region16: #{tpu_custom_call.1} parent=1 // pred_region
      %87 = vsyncadd [#allocation4], 0
      %s88 = sshll.u32 [#allocation5], 4
      %s89 = int_to_ptr.vmem [resolvable:$true] %s88
      %s90 = sshll.u32 %s2, 4
      %s91 = int_to_ptr.hbm [resolvable:$true] %s90
      %96 = dma.vmem_to_hbm [thread:$0]  %s89, 256, %s91, [#allocation4], 128, 128, 8
    $region17: #{tpu_custom_call.1} parent=1 // pred_fallthru
      _
    // Predicated region
    $region18: #{tpu_custom_call.1} parent=1 // pred_check
      _
    $region19: #{tpu_custom_call.1} parent=1 // pred_check_branch
      %98 = sbr.rel (0) target = $region21
    $region20: #{tpu_custom_call.1} parent=1 // pred_region
      %100 = dma.done [#allocation4], 256
    $region21: #{tpu_custom_call.1} parent=1 // pred_fallthru
      _
    %101 = vsyncpa [#allocation3], 1
    %102 = vsyncpa [#allocation4], 1

</llo_original>
